<compile_context>
chip_gen: v7x
topology: tpu7x:2x2x1
jax: 0.10.0
libtpu: 0.0.40
codegen_flags: <defaults>
</compile_context>

<pallas_src>
import functools

import jax
import jax.numpy as jnp
from jax.experimental import pallas as pl
from jax.experimental.pallas import tpu as pltpu

_PW_EPS = 1e-6                    # torch.nn.functional.pairwise_distance default eps
_DEFAULT_MARGIN = 2.0
# Budget for the streamed feature inputs (2 inputs x 2 pipeline buffers x TB x D x 4B).
# 8 MiB keeps double-buffering intact on every generation (v5e 16 MiB scoped default,
# v7x 64 MiB physical VMEM) with plenty of headroom.
_INPUT_VMEM_BUDGET = 8 * 1024 * 1024
_VMEM_LIMIT_BYTES = 32 * 1024 * 1024


def _round_up(x, m):
    return ((x + m - 1) // m) * m


def _choose_tile_rows(batch, feat, itemsize):
    """Biggest 8-multiple row tile whose double-buffered working set fits the budget."""
    bytes_per_row = 2 * 2 * feat * max(int(itemsize), 1)   # 2 inputs x 2 buffers
    tb = _INPUT_VMEM_BUDGET // max(bytes_per_row, 1)
    tb = max(8, (tb // 8) * 8)
    tb = min(tb, _round_up(batch, 8))   # never bigger than the (padded) batch
    tb = min(tb, 4096)
    return int(tb)


def _contrastive_loss_kernel(x1_ref, x2_ref, label_ref, out_ref, acc_ref,
                             *, total_rows, tile_rows, margin):
    i = pl.program_id(0)

    @pl.when(i == 0)
    def _init():
        acc_ref[0] = jnp.float32(0.0)

    # Keep HBM-side dtype as supplied (bf16 welcome); do math in f32.
    x1 = x1_ref[...].astype(jnp.float32)          # (TB, D)
    x2 = x2_ref[...].astype(jnp.float32)          # (TB, D)
    label = label_ref[...].astype(jnp.float32)    # (TB, 1)

    # F.pairwise_distance: ||x1 - x2 + eps||_2 along the feature axis.
    diff = x1 - x2 + jnp.float32(_PW_EPS)
    sq_sum = jnp.sum(diff * diff, axis=-1, keepdims=True)     # (TB, 1) == d^2
    dist = jnp.sqrt(sq_sum)                                    # (TB, 1) == d

    pos = (1.0 - label) * sq_sum                  # (1-l) * d^2 (no sqrt->re-square)
    hinge = jnp.maximum(jnp.float32(margin) - dist, 0.0)
    neg = label * hinge * hinge
    per_row = pos + neg                                        # (TB, 1)

    # Mask padded rows of the last tile so they contribute neither to the sum
    # nor (implicitly) to the mean denominator.
    row_ids = jax.lax.broadcasted_iota(jnp.int32, per_row.shape, 0) + i * tile_rows
    per_row = jnp.where(row_ids < total_rows, per_row, 0.0)

    acc_ref[0] += jnp.sum(per_row)

    @pl.when(i == pl.num_programs(0) - 1)
    def _finalize():
        out_ref[0, 0] = acc_ref[0] / jnp.float32(total_rows)


def contrastive_loss(out1, out2, label, margin=_DEFAULT_MARGIN, tile_rows=None):
    out1 = jnp.asarray(out1)
    out2 = jnp.asarray(out2)
    label = jnp.asarray(label)
    B, D = out1.shape
    if label.ndim == 1:
        label = label.reshape(B, 1)

    if tile_rows is None:
        tile_rows = _choose_tile_rows(B, D, jnp.dtype(out1.dtype).itemsize)
    tile_rows = max(8, _round_up(int(tile_rows), 8))

    # Zero-pad the batch to a whole number of tiles; padded rows are masked in-kernel.
    b_pad = _round_up(B, tile_rows)
    if b_pad != B:
        pad = ((0, b_pad - B), (0, 0))
        out1 = jnp.pad(out1, pad)
        out2 = jnp.pad(out2, pad)
        label = jnp.pad(label, pad)
    num_tiles = b_pad // tile_rows

    kernel = functools.partial(
        _contrastive_loss_kernel,
        total_rows=B, tile_rows=tile_rows, margin=float(margin))

    loss = pl.pallas_call(
        kernel,
        out_shape=jax.ShapeDtypeStruct((1, 1), jnp.float32),
        grid_spec=pltpu.PrefetchScalarGridSpec(
            num_scalar_prefetch=0,
            grid=(num_tiles,),
            in_specs=[
                pl.BlockSpec((tile_rows, D), lambda i: (i, 0)),
                pl.BlockSpec((tile_rows, D), lambda i: (i, 0)),
                pl.BlockSpec((tile_rows, 1), lambda i: (i, 0)),
            ],
            out_specs=pl.BlockSpec(memory_space=pltpu.MemorySpace.SMEM),
            scratch_shapes=[pltpu.SMEM((1,), jnp.float32)],
        ),
        compiler_params=pltpu.CompilerParams(
            dimension_semantics=("arbitrary",),   # reduction axis (resident accumulator)
            vmem_limit_bytes=_VMEM_LIMIT_BYTES,
        ),
    )(out1, out2, label)
    return loss[0, 0]


def _reference(out1, out2, label, margin=_DEFAULT_MARGIN):
    # Pure-JAX reference mirroring the PyTorch forward.
    d = jnp.sqrt(jnp.sum(jnp.square(out1 - out2 + _PW_EPS), axis=-1, keepdims=True))
    lbl = label.reshape(d.shape)
    return jnp.mean((1.0 - lbl) * d**2 + lbl * jnp.square(jnp.clip(margin - d, 0.0)))


if __name__ == "__main__":
    key = jax.random.PRNGKey(0)

    cases = [
        # (B, D, forced tile_rows)
        (8, 32, None),   # tiny single-tile fast path
        (20, 128, 8),    # multi-tile streaming accumulation + masked remainder rows
    ]
    for B, D, tb in cases:
        key, k1, k2, k3 = jax.random.split(key, 4)
        out1 = jax.random.normal(k1, (B, D), dtype=jnp.float32)
        out2 = jax.random.normal(k2, (B, D), dtype=jnp.float32)
        label = jax.random.bernoulli(k3, p=0.5, shape=(B, 1)).astype(jnp.float32)

        loss = jax.block_until_ready(contrastive_loss(out1, out2, label, tile_rows=tb))
        ref = _reference(out1, out2, label)
        assert jnp.allclose(loss, ref, rtol=1e-5, atol=1e-5), (B, D, tb, float(loss), float(ref))

    print("KERNEL_OK")
</pallas_src>

<mosaic_0001>
module attributes {stable_mosaic.version = 11 : i64} {
  func.func @_contrastive_loss_kernel(%arg0: i32, %arg1: memref<8x32xf32, #tpu.memory_space<vmem>>, %arg2: memref<8x32xf32, #tpu.memory_space<vmem>>, %arg3: memref<8x1xf32, #tpu.memory_space<vmem>>, %arg4: memref<1x1xf32, #tpu.memory_space<smem>>, %arg5: memref<1xf32, #tpu.memory_space<smem>>) attributes {dimension_semantics = [#tpu.dimension_semantics<arbitrary>], iteration_bounds = array<i64: 1>, scalar_prefetch = 0 : i64, scratch_operands = 1 : i64, tpu.core_type = #tpu.core_type<tc>, window_params = [{transform_indices = @transform_0, window_bounds = array<i64: 8, 32>}, {transform_indices = @transform_1, window_bounds = array<i64: 8, 32>}, {transform_indices = @transform_2, window_bounds = array<i64: 8, 1>}, {transform_indices = @transform_3, window_bounds = array<i64: 1, 1>}]} {
    %c0_i32 = arith.constant 0 : i32
    %0 = arith.cmpi eq, %arg0, %c0_i32 : i32
    %1 = arith.extui %0 : i1 to i32
    %c0_i32_0 = arith.constant 0 : i32
    %2 = arith.cmpi ne, %1, %c0_i32_0 : i32
    scf.if %2 {
      %cst_17 = arith.constant 0.000000e+00 : f32
      %c0_18 = arith.constant 0 : index
      %41 = memref.load %arg5[%c0_18] : memref<1xf32, #tpu.memory_space<smem>>
      memref.store %cst_17, %arg5[%c0_18] : memref<1xf32, #tpu.memory_space<smem>>
    } else {
    }
    %c0 = arith.constant 0 : index
    %c0_1 = arith.constant 0 : index
    %3 = vector.load %arg1[%c0, %c0_1] : memref<8x32xf32, #tpu.memory_space<vmem>>, vector<8x32xf32>
    %c0_2 = arith.constant 0 : index
    %c0_3 = arith.constant 0 : index
    %4 = vector.load %arg2[%c0_2, %c0_3] : memref<8x32xf32, #tpu.memory_space<vmem>>, vector<8x32xf32>
    %c0_4 = arith.constant 0 : index
    %c0_5 = arith.constant 0 : index
    %5 = vector.load %arg3[%c0_4, %c0_5] : memref<8x1xf32, #tpu.memory_space<vmem>>, vector<8x1xf32>
    %6 = arith.subf %3, %4 : vector<8x32xf32>
    %cst = arith.constant 9.99999997E-7 : f32
    %7 = vector.broadcast %cst : f32 to vector<8x32xf32>
    %8 = arith.addf %6, %7 : vector<8x32xf32>
    %9 = arith.mulf %8, %8 : vector<8x32xf32>
    %cst_6 = arith.constant dense<0.000000e+00> : vector<8xf32>
    %10 = vector.multi_reduction <add>, %9, %cst_6 [1] : vector<8x32xf32> to vector<8xf32>
    %11 = vector.shape_cast %10 : vector<8xf32> to vector<8x1xf32>
    %12 = math.sqrt %11 : vector<8x1xf32>
    %cst_7 = arith.constant 1.000000e+00 : f32
    %13 = vector.broadcast %cst_7 : f32 to vector<8x1xf32>
    %14 = arith.subf %13, %5 : vector<8x1xf32>
    %15 = arith.mulf %14, %11 : vector<8x1xf32>
    %cst_8 = arith.constant 2.000000e+00 : f32
    %16 = vector.broadcast %cst_8 : f32 to vector<8x1xf32>
    %17 = arith.subf %16, %12 : vector<8x1xf32>
    %cst_9 = arith.constant 0.000000e+00 : f32
    %18 = vector.broadcast %cst_9 : f32 to vector<8x1xf32>
    %19 = arith.maximumf %17, %18 : vector<8x1xf32>
    %20 = arith.mulf %5, %19 : vector<8x1xf32>
    %21 = arith.mulf %20, %19 : vector<8x1xf32>
    %22 = arith.addf %15, %21 : vector<8x1xf32>
    %23 = tpu.iota {dimensions = array<i32: 0>} : vector<8x1xi32>
    %c8_i32 = arith.constant 8 : i32
    %24 = arith.muli %arg0, %c8_i32 : i32
    %25 = vector.broadcast %24 : i32 to vector<8x1xi32>
    %26 = arith.addi %23, %25 : vector<8x1xi32>
    %c8_i32_10 = arith.constant 8 : i32
    %27 = vector.broadcast %c8_i32_10 : i32 to vector<8x1xi32>
    %28 = arith.cmpi slt, %26, %27 : vector<8x1xi32>
    %cst_11 = arith.constant 0.000000e+00 : f32
    %29 = vector.broadcast %cst_11 : f32 to vector<8x1xf32>
    %30 = arith.select %28, %22, %29 : vector<8x1xi1>, vector<8x1xf32>
    %c0_12 = arith.constant 0 : index
    %31 = memref.load %arg5[%c0_12] : memref<1xf32, #tpu.memory_space<smem>>
    %32 = vector.shape_cast %30 : vector<8x1xf32> to vector<1x8x1xf32>
    %cst_13 = arith.constant dense<0.000000e+00> : vector<1xf32>
    %33 = vector.multi_reduction <add>, %32, %cst_13 [1, 2] : vector<1x8x1xf32> to vector<1xf32>
    %34 = vector.shape_cast %33 : vector<1xf32> to vector<1x1x1xf32>
    %35 = vector.extract %34[0, 0, 0] : f32 from vector<1x1x1xf32>
    %36 = arith.addf %31, %35 : f32
    %c0_14 = arith.constant 0 : index
    %37 = memref.load %arg5[%c0_14] : memref<1xf32, #tpu.memory_space<smem>>
    memref.store %36, %arg5[%c0_14] : memref<1xf32, #tpu.memory_space<smem>>
    %c0_i32_15 = arith.constant 0 : i32
    %38 = arith.cmpi eq, %arg0, %c0_i32_15 : i32
    %39 = arith.extui %38 : i1 to i32
    %c0_i32_16 = arith.constant 0 : i32
    %40 = arith.cmpi ne, %39, %c0_i32_16 : i32
    scf.if %40 {
      %c0_17 = arith.constant 0 : index
      %41 = memref.load %arg5[%c0_17] : memref<1xf32, #tpu.memory_space<smem>>
      %cst_18 = arith.constant 8.000000e+00 : f32
      %42 = arith.divf %41, %cst_18 : f32
      %c0_19 = arith.constant 0 : index
      %c0_20 = arith.constant 0 : index
      %43 = memref.load %arg4[%c0_19, %c0_20] : memref<1x1xf32, #tpu.memory_space<smem>>
      memref.store %42, %arg4[%c0_19, %c0_20] : memref<1x1xf32, #tpu.memory_space<smem>>
    } else {
    }
    return
  }
  func.func @transform_0(%arg0: i32) -> (i32, i32) {
    %c0_i32 = arith.constant 0 : i32
    %c0_i32_0 = arith.constant 0 : i32
    return %arg0, %c0_i32 : i32, i32
  }
  func.func @transform_1(%arg0: i32) -> (i32, i32) {
    %c0_i32 = arith.constant 0 : i32
    %c0_i32_0 = arith.constant 0 : i32
    return %arg0, %c0_i32 : i32, i32
  }
  func.func @transform_2(%arg0: i32) -> (i32, i32) {
    %c0_i32 = arith.constant 0 : i32
    %c0_i32_0 = arith.constant 0 : i32
    return %arg0, %c0_i32 : i32, i32
  }
  func.func @transform_3(%arg0: i32) -> (i32, i32) {
    %c0_i32 = arith.constant 0 : i32
    %c0_i32_0 = arith.constant 0 : i32
    %c0_i32_1 = arith.constant 0 : i32
    return %c0_i32, %c0_i32_0 : i32, i32
  }
}

</mosaic_0001>

<llo_original>
// kernel: tpu_custom_call.1
$region0: #{tpu_custom_call.1}
  #allocation0 [shape = 'u32[]', space=smem, size = 0x4, offset = 0x4, fixed_abs, tag = 'smem constant byte address 0x4 - core index']
  #allocation1 [shape = 'u32[144,128]{1,0:T(1,128)}', space=vmem, size = 0x12000, scoped, tag = 'internal scratch']
  #allocation2 [shape = 'f32[1]{0:T(128)}', space=smem, size = 0x200, scoped, tag = 'scratch operand']
  %s0 = inlined_call_operand.vmem [shape: f32[8,32], index: 0, kind: input, shape index: {}]
  %s1 = inlined_call_operand.hbm [shape: f32[8,32], index: 1, kind: input, shape index: {}]
  %s2 = inlined_call_operand.vmem [shape: f32[8,1], index: 2, kind: input, shape index: {}]
  %s3 = inlined_call_operand.hbm [shape: f32[1,1], index: 3, kind: output, shape index: {}]
  %s4 = sld [smem:[#allocation0]]
  $region34: #{tpu_custom_call.1} parent=0
    _
  %s6 = ssub.s32 1, %s4
  %s7 = scalar_select 0, %s6, %s4
  $region1: #{tpu_custom_call.1} parent=0
    #allocation3 [shape = 'u8[4096]{0}', space=vmem, size = 0x1000, scoped, tag = 'input window, operand 1, single buffered']
    #allocation4 [shape = 's32[1]{0}', space=sflag, size = 0x4, scoped, tag = 'scoped memory for tpu_custom_call.1']
    #allocation5 [shape = 's32[1]{0}', space=sflag, size = 0x4, scoped, tag = 'scoped memory for tpu_custom_call.1']
    #allocation6 [shape = 'u8[512]{0}', space=smem, size = 0x200, scoped, tag = 'output window, operand 0, single buffered']
    %8 = vsyncpa [#allocation4], 0
    %9 = vsyncpa [#allocation5], 0
    // Predicated region
    $region2: #{tpu_custom_call.1} parent=1 // pred_check
      _
    $region3: #{tpu_custom_call.1} parent=1 // pred_check_branch
      %11 = sbr.rel (0) target = $region5
    $region4: #{tpu_custom_call.1} parent=1 // pred_region
      _
    $region5: #{tpu_custom_call.1} parent=1 // pred_fallthru
      _
    // Predicated region
    $region6: #{tpu_custom_call.1} parent=1 // pred_check
      _
    $region7: #{tpu_custom_call.1} parent=1 // pred_check_branch
      %13 = sbr.rel (0) target = $region9
    $region8: #{tpu_custom_call.1} parent=1 // pred_region
      %s15 = ssub.s32 128, 128
      %16 = vsyncadd [#allocation4], %s15
      %s18 = sshll.u32 [#allocation3], 4
      %s19 = int_to_ptr.vmem [resolvable:$true] %s18
      %21 = dma.hbm_to_vmem [thread:$0]  %s1, 128, %s19, [#allocation4]
    $region9: #{tpu_custom_call.1} parent=1 // pred_fallthru
      _
    // Predicated region
    $region10: #{tpu_custom_call.1} parent=1 // pred_check
      _
    $region11: #{tpu_custom_call.1} parent=1 // pred_check_branch
      %23 = sbr.rel (0) target = $region13
    $region12: #{tpu_custom_call.1} parent=1 // pred_region
      _
    $region13: #{tpu_custom_call.1} parent=1 // pred_fallthru
      _
    // Predicated region
    $region14: #{tpu_custom_call.1} parent=1 // pred_check
      _
    $region15: #{tpu_custom_call.1} parent=1 // pred_check_branch
      %25 = sbr.rel (0) target = $region17
    $region16: #{tpu_custom_call.1} parent=1 // pred_region
      %26 = dma.done [#allocation4], 128
    $region17: #{tpu_custom_call.1} parent=1 // pred_fallthru
      _
    %p27 = scmp.eq.s32.totalorder 0, 0
    // Predicated region
    $region18: #{tpu_custom_call.1} parent=1 // pred_check
      %p28 = pneg %p27
    $region19: #{tpu_custom_call.1} parent=1 // pred_check_branch
      %30 = sbr.rel (%p28) target = $region21
    $region20: #{tpu_custom_call.1} parent=1 // pred_region
      %s31 = scalar_lea.smem [#allocation2], 0
      %32 = sst [smem:[%s31]] 0.0
    $region21: #{tpu_custom_call.1} parent=1 // pred_fallthru
      _
    %v33 = vld [vmem:[%s0] sm:$0xff]
    %v34 = vld [vmem:[#allocation3] sm:$0xff]
    %v35 = vld [vmem:[%s2] sm:$0xff]
    %v36 = vsub.f32 %v33, %v34
    %v37 = vadd.f32 %v36, 1e-06
    %v38 = vmul.f32 %v37, %v37
    %vm39 = vcmask 261120
    %v40 = vsel %vm39, %v38, 0.0
    %41 = vadd.xlane.f32.xlu0 %v40
    %v42 = vpop.xlane.xlu0 %41
    %v43 = vrsqrt.pop %v42
    %v44 = vmul.f32 %v42, %v43
    %vm45 = vcmp.eq.f32.partialorder %v42, inf
    %v46 = vsel %vm45, %v42, %v44
    %vm47 = vcmp.eq.f32.partialorder %v42, 0.0
    %v48 = vand.u32 %v42, 2147483648
    %v49 = vsel %vm47, %v48, %v46
    %v50 = vsub.f32 1.0, %v35
    %v51 = vmul.f32 %v50, %v42
    %v52 = vsub.f32 2.0, %v49
    %v53 = vmax.f32 %v52, 0.0
    %v54 = vmul.f32 %v35, %v53
    %v55 = vmul.f32 %v54, %v53
    %v56 = vadd.f32 %v51, %v55
    %v57 = vlaneseq
    %v58 = vshrl.u32 %v57, 7
    %s59 = smul.u32 0, 8
    %v60 = vstv %s59
    %v61 = vadd.s32 %v58, %v60
    %vm62 = vcmp.lt.s32.totalorder %v61, 8
    %v63 = vsel %vm62, %v56, 0.0
    %s64 = sld [smem:[#allocation2]]
    %vm65 = vcmask 7168
    %v66 = vsel %vm65, %v63, 0.0
    %67 = vadd.xlane.f32.xlu0 %v66
    %v68 = vpop.xlane.xlu0 %67
    %v69 = vrot.slane %v68, 4
    %v70 = vadd.f32 %v68, %v69
    %v71 = vrot.slane %v70, 2
    %v72 = vadd.f32 %v70, %v71
    %v73 = vrot.slane %v72, 1
    %v74 = vadd.f32 %v72, %v73
    %s75 = vtos %v74
    %s76 = sadd.f32 %s64, %s75
    %s77 = scalar_lea.smem [#allocation2], 0
    %78 = sst [smem:[%s77]] %s76
    // Predicated region
    $region22: #{tpu_custom_call.1} parent=1 // pred_check
      %p79 = pneg %p27
    $region23: #{tpu_custom_call.1} parent=1 // pred_check_branch
      %81 = sbr.rel (%p79) target = $region25
    $region24: #{tpu_custom_call.1} parent=1 // pred_region
      %s82 = sld [smem:[#allocation2]]
      %v83 = vrcp.pop 8.0
      %s84 = vtos %v83
      %s85 = smul.f32 %s82, %s84
      %s86 = scalar_lea.smem [#allocation6], 0
      %87 = sst [smem:[%s86]] %s85
    $region25: #{tpu_custom_call.1} parent=1 // pred_fallthru
      _
    // Predicated region
    $region26: #{tpu_custom_call.1} parent=1 // pred_check
      _
    $region27: #{tpu_custom_call.1} parent=1 // pred_check_branch
      %89 = sbr.rel (0) target = $region29
    $region28: #{tpu_custom_call.1} parent=1 // pred_region
      %s91 = ssub.s32 16, 16
      %92 = vsyncadd [#allocation5], %s91
      %95 = dma.smem_to_hbm [#allocation6], 16, %s3, [#allocation5]
    $region29: #{tpu_custom_call.1} parent=1 // pred_fallthru
      _
    // Predicated region
    $region30: #{tpu_custom_call.1} parent=1 // pred_check
      _
    $region31: #{tpu_custom_call.1} parent=1 // pred_check_branch
      %97 = sbr.rel (0) target = $region33
    $region32: #{tpu_custom_call.1} parent=1 // pred_region
      %98 = dma.done [#allocation5], 16
    $region33: #{tpu_custom_call.1} parent=1 // pred_fallthru
      _
    %99 = sfence
    %100 = vsyncpa [#allocation4], 1
    %101 = vsyncpa [#allocation5], 1

</llo_original>
